<compile_context>
chip_gen: v5e
topology: v5e:2x2
jax: 0.10.0
libtpu: 0.0.40
codegen_flags: <defaults>
</compile_context>

<pallas_src>
import functools
import math

import jax
import jax.numpy as jnp
from jax.experimental import pallas as pl
from jax.experimental.pallas import tpu as pltpu

_EPS = 1e-5  # nn.InstanceNorm2d default

# VMEM byte budget per pallas_call for pipeline buffers + in-kernel f32 temps.
# Conservative so double-buffered in+out blocks plus temporaries stay well under the
# default scoped limits (16 MiB v5e / 32 MiB v6e,v7x) and v7x's 64 MiB physical VMEM.
_VMEM_BUDGET = 24 * 1024 * 1024
_MIN_GRID_STEPS = 8   # pipeline overlap + megacore (2 TCs on v7x) sharding


# ----------------------------------------------------------------------------
# Pallas kernels
# ----------------------------------------------------------------------------

def _style_linear_kernel(s_ref, w_ref, b_ref, o_ref):
    # s: (B, S), w: (S, 2C) (already EqualLR-scaled), b: (1, 2C) -> o: (B, 2C)
    o_ref[...] = (jnp.dot(s_ref[...], w_ref[...],
                          preferred_element_type=jnp.float32)
                  + b_ref[...]).astype(o_ref.dtype)


def _adain_kernel(x_ref, g_ref, b_ref, o_ref, *, inv_n, axis):
    # Single stats pass (sum / sumsq), no centered full-tile temporary, then one
    # fused multiply-add per element:  out = x * a + c.
    #   axis=1: x is (tile_r, HW), g/b are (tile_r, 1)   (reduce over lanes)
    #   axis=0: x is (HW, tile_c), g/b are (1, tile_c)   (reduce over sublanes)
    x = x_ref[...].astype(jnp.float32)
    mean = jnp.sum(x, axis=axis, keepdims=True) * inv_n
    var = jnp.sum(x * x, axis=axis, keepdims=True) * inv_n - mean * mean
    var = jnp.maximum(var, 0.0)                      # guard tiny negative rounding
    a = g_ref[...] * jax.lax.rsqrt(var + _EPS)
    c = b_ref[...] - mean * a
    o_ref[...] = (x * a + c).astype(o_ref.dtype)


# ----------------------------------------------------------------------------
# Tiling policy
# ----------------------------------------------------------------------------

def _round_down(v, m):
    return (v // m) * m


def _pick_tile(n, bytes_per_unit, align):
    """Tile extent along the per-(b,c)-row axis: a multiple of `align` (or the full
    extent), sized by the VMEM byte budget, aiming for >= _MIN_GRID_STEPS grid steps."""
    if n <= align:
        return n                                      # full extent (always legal)
    tile = _round_down(_VMEM_BUDGET // max(bytes_per_unit, 1), align)
    tile = max(align, min(tile, n))
    if n >= align * _MIN_GRID_STEPS:
        tile = min(tile, max(align, _round_down(n // _MIN_GRID_STEPS, align)))
    return tile


def _compiler_params(block_bytes):
    # Explicit scoped-VMEM limit: what the chosen tile needs plus headroom, bounded to
    # stay comfortably inside v7x's 64 MiB physical VMEM.
    limit = int(min(max(block_bytes + (8 << 20), 32 << 20), 56 << 20))
    return pltpu.CompilerParams(
        dimension_semantics=("parallel",),
        vmem_limit_bytes=limit,
    )


# ----------------------------------------------------------------------------
# Wrappers
# ----------------------------------------------------------------------------

def style_linear(style, weight, bias):
    """EqualLinear: style @ (weight * sqrt(2/fan_in)).T + bias -> (B, 2C)."""
    B, S = style.shape
    out_dim = weight.shape[0]
    scale = math.sqrt(2.0 / S)
    # Fold the EqualLR scale into the (tiny) weight operand outside the kernel.
    w_scaled = (weight.astype(jnp.float32) * scale).T        # (S, 2C)
    return pl.pallas_call(
        _style_linear_kernel,
        out_shape=jax.ShapeDtypeStruct((B, out_dim), jnp.float32),
    )(style.astype(jnp.float32), w_scaled,
      bias.reshape(1, out_dim).astype(jnp.float32))


def adain_norm_modulate(x_nchw, gamma, beta):
    """Fused InstanceNorm2d (no affine, eps=1e-5) + per-(b,c) scale/shift.

    x: (B, C, H, W); gamma, beta: (B, C). Returns (B, C, H, W).
    """
    B, C, H, W = x_nchw.shape
    rows, hw = B * C, H * W
    itemsize = jnp.dtype(x_nchw.dtype).itemsize
    # VMEM bytes per (b,c) row of work: double-buffered input + output blocks plus the
    # in-kernel f32 copy of x.
    per_unit = hw * ((itemsize + itemsize) * 2 + 4)

    g_f32 = gamma.astype(jnp.float32)
    b_f32 = beta.astype(jnp.float32)

    # Small spatial maps -> transposed layout so the lane axis stays dense.
    use_cols = (hw < 128) or (hw % 128 != 0 and rows >= 128)
    # TODO(synk): for very large spatial maps (hw so big that even an 8-row / 128-col
    # tile exceeds the VMEM budget, e.g. 512x512+), add an hw-chunked two-pass
    # (stats accumulate, then apply) grid instead of one resident (tile, hw) block.

    if not use_cols:
        tile_r = _pick_tile(rows, per_unit, 8)
        grid = (pl.cdiv(rows, tile_r),)
        x2 = x_nchw.reshape(rows, hw)                 # free reshape (contiguous NCHW)
        out = pl.pallas_call(
            functools.partial(_adain_kernel, inv_n=1.0 / hw, axis=1),
            out_shape=jax.ShapeDtypeStruct((rows, hw), x_nchw.dtype),
            grid=grid,
            in_specs=[
                pl.BlockSpec((tile_r, hw), lambda i: (i, 0)),
                pl.BlockSpec((tile_r, 1), lambda i: (i, 0)),
                pl.BlockSpec((tile_r, 1), lambda i: (i, 0)),
            ],
            out_specs=pl.BlockSpec((tile_r, hw), lambda i: (i, 0)),
            compiler_params=_compiler_params(tile_r * per_unit),
        )(x2, g_f32.reshape(rows, 1), b_f32.reshape(rows, 1))
        return out.reshape(B, C, H, W)

    # Transposed path: lanes = (b, c) rows (dense), sublanes = flattened spatial.
    tile_c = _pick_tile(rows, per_unit, 128)
    grid = (pl.cdiv(rows, tile_c),)
    x2 = x_nchw.reshape(rows, hw).T                   # (hw, rows); layout plumbing via XLA
    out = pl.pallas_call(
        functools.partial(_adain_kernel, inv_n=1.0 / hw, axis=0),
        out_shape=jax.ShapeDtypeStruct((hw, rows), x_nchw.dtype),
        grid=grid,
        in_specs=[
            pl.BlockSpec((hw, tile_c), lambda j: (0, j)),
            pl.BlockSpec((1, tile_c), lambda j: (0, j)),
            pl.BlockSpec((1, tile_c), lambda j: (0, j)),
        ],
        out_specs=pl.BlockSpec((hw, tile_c), lambda j: (0, j)),
        compiler_params=_compiler_params(tile_c * per_unit),
    )(x2, g_f32.reshape(1, rows), b_f32.reshape(1, rows))
    return out.T.reshape(B, C, H, W)


@jax.jit
def adaptive_instance_norm(x, style, weight, bias):
    """Full AdaptiveInstanceNorm forward: x (B,C,H,W), style (B,S)."""
    _, C, _, _ = x.shape
    s = style_linear(style, weight, bias)   # (B, 2C)
    gamma = s[:, :C]
    beta = s[:, C:]
    return adain_norm_modulate(x, gamma, beta)


# ----------------------------------------------------------------------------
# Pure-JAX reference (mirrors the PyTorch module exactly) for verification
# ----------------------------------------------------------------------------

def _reference(x, style, weight, bias):
    S = style.shape[1]
    C = x.shape[1]
    w = weight * math.sqrt(2.0 / S)
    s = style @ w.T + bias
    gamma = s[:, :C][:, :, None, None]
    beta = s[:, C:][:, :, None, None]
    mean = jnp.mean(x, axis=(2, 3), keepdims=True)
    var = jnp.mean((x - mean) ** 2, axis=(2, 3), keepdims=True)
    out = (x - mean) / jnp.sqrt(var + _EPS)
    return gamma * out + beta


# ----------------------------------------------------------------------------
# Demo
# ----------------------------------------------------------------------------

if __name__ == "__main__":
    key = jax.random.PRNGKey(0)
    kx, ks, kw, kx2, ks2, kw2 = jax.random.split(key, 6)

    # Case 1: hw >= 128 -> lane-dense (B*C, H*W) path.
    B, C, H, W = 2, 4, 16, 16
    style_dim = 32
    x = jax.random.normal(kx, (B, C, H, W), jnp.float32)
    style = jax.random.normal(ks, (B, style_dim), jnp.float32)
    # EqualLinear init: weight ~ N(0,1); bias = [1]*C ++ [0]*C (as in the module).
    weight = jax.random.normal(kw, (2 * C, style_dim), jnp.float32)
    bias = jnp.concatenate(
        [jnp.ones((C,), jnp.float32), jnp.zeros((C,), jnp.float32)])

    out = jax.block_until_ready(adaptive_instance_norm(x, style, weight, bias))
    ref = _reference(x, style, weight, bias)
    assert out.shape == (B, C, H, W), out.shape
    assert bool(jnp.all(jnp.isfinite(out)))
    assert float(jnp.max(jnp.abs(out - ref))) < 1e-3

    # Case 2: small spatial map (hw < 128) -> transposed lane-dense path.
    B2, C2, H2, W2 = 2, 64, 4, 4
    x_s = jax.random.normal(kx2, (B2, C2, H2, W2), jnp.float32)
    style_s = jax.random.normal(ks2, (B2, style_dim), jnp.float32)
    weight_s = jax.random.normal(kw2, (2 * C2, style_dim), jnp.float32)
    bias_s = jnp.concatenate(
        [jnp.ones((C2,), jnp.float32), jnp.zeros((C2,), jnp.float32)])

    out_s = jax.block_until_ready(
        adaptive_instance_norm(x_s, style_s, weight_s, bias_s))
    ref_s = _reference(x_s, style_s, weight_s, bias_s)
    assert out_s.shape == (B2, C2, H2, W2), out_s.shape
    assert bool(jnp.all(jnp.isfinite(out_s)))
    assert float(jnp.max(jnp.abs(out_s - ref_s))) < 1e-3

    print("KERNEL_OK")
</pallas_src>

<mosaic_0001>
module attributes {stable_mosaic.version = 11 : i64} {
  func.func @_style_linear_kernel(%arg0: memref<2x32xf32, #tpu.memory_space<vmem>>, %arg1: memref<32x8xf32, #tpu.memory_space<vmem>>, %arg2: memref<1x8xf32, #tpu.memory_space<vmem>>, %arg3: memref<2x8xf32, #tpu.memory_space<vmem>>) attributes {dimension_semantics = [], scalar_prefetch = 0 : i64, scratch_operands = 0 : i64, tpu.core_type = #tpu.core_type<tc>} {
    %c0 = arith.constant 0 : index
    %c0_0 = arith.constant 0 : index
    %0 = vector.load %arg0[%c0, %c0_0] : memref<2x32xf32, #tpu.memory_space<vmem>>, vector<2x32xf32>
    %c0_1 = arith.constant 0 : index
    %c0_2 = arith.constant 0 : index
    %1 = vector.load %arg1[%c0_1, %c0_2] : memref<32x8xf32, #tpu.memory_space<vmem>>, vector<32x8xf32>
    %cst = arith.constant dense<0.000000e+00> : vector<2x8xf32>
    %2 = tpu.matmul %0, %1, %cst {dimension_numbers = #tpu.dot_dimension_numbers<[1], [0], [0], [1], [0, 0, 1, 1], [], []>} : vector<2x32xf32>, vector<32x8xf32>, vector<2x8xf32> -> vector<2x8xf32>
    %c0_3 = arith.constant 0 : index
    %c0_4 = arith.constant 0 : index
    %3 = vector.load %arg2[%c0_3, %c0_4] : memref<1x8xf32, #tpu.memory_space<vmem>>, vector<1x8xf32>
    %4 = vector.broadcast %3 : vector<1x8xf32> to vector<2x8xf32>
    %5 = arith.addf %2, %4 : vector<2x8xf32>
    %c0_5 = arith.constant 0 : index
    %c0_6 = arith.constant 0 : index
    %6 = vector.load %arg3[%c0_5, %c0_6] : memref<2x8xf32, #tpu.memory_space<vmem>>, vector<2x8xf32>
    tpu.vector_store %arg3[%c0_5, %c0_6], %5 {strides = array<i32>} : memref<2x8xf32, #tpu.memory_space<vmem>>, vector<2x8xf32>,
    return
  }
}

module attributes {stable_mosaic.version = 11 : i64} {
  func.func @_adain_kernel(%arg0: i32, %arg1: memref<8x256xf32, #tpu.memory_space<vmem>>, %arg2: memref<8x1xf32, #tpu.memory_space<vmem>>, %arg3: memref<8x1xf32, #tpu.memory_space<vmem>>, %arg4: memref<8x256xf32, #tpu.memory_space<vmem>>) attributes {dimension_semantics = [#tpu.dimension_semantics<parallel>], iteration_bounds = array<i64: 1>, scalar_prefetch = 0 : i64, scratch_operands = 0 : i64, tpu.core_type = #tpu.core_type<tc>, window_params = [{transform_indices = @transform_0, window_bounds = array<i64: 8, 256>}, {transform_indices = @transform_1, window_bounds = array<i64: 8, 1>}, {transform_indices = @transform_2, window_bounds = array<i64: 8, 1>}, {transform_indices = @transform_3, window_bounds = array<i64: 8, 256>}]} {
    %c0 = arith.constant 0 : index
    %c0_0 = arith.constant 0 : index
    %0 = vector.load %arg1[%c0, %c0_0] : memref<8x256xf32, #tpu.memory_space<vmem>>, vector<8x256xf32>
    %cst = arith.constant dense<0.000000e+00> : vector<8xf32>
    %1 = vector.multi_reduction <add>, %0, %cst [1] : vector<8x256xf32> to vector<8xf32>
    %2 = vector.shape_cast %1 : vector<8xf32> to vector<8x1xf32>
    %cst_1 = arith.constant 3.906250e-03 : f32
    %3 = vector.broadcast %cst_1 : f32 to vector<8x1xf32>
    %4 = arith.mulf %2, %3 : vector<8x1xf32>
    %5 = arith.mulf %0, %0 : vector<8x256xf32>
    %cst_2 = arith.constant dense<0.000000e+00> : vector<8xf32>
    %6 = vector.multi_reduction <add>, %5, %cst_2 [1] : vector<8x256xf32> to vector<8xf32>
    %7 = vector.shape_cast %6 : vector<8xf32> to vector<8x1xf32>
    %cst_3 = arith.constant 3.906250e-03 : f32
    %8 = vector.broadcast %cst_3 : f32 to vector<8x1xf32>
    %9 = arith.mulf %7, %8 : vector<8x1xf32>
    %10 = arith.mulf %4, %4 : vector<8x1xf32>
    %11 = arith.subf %9, %10 : vector<8x1xf32>
    %cst_4 = arith.constant 0.000000e+00 : f32
    %12 = vector.broadcast %cst_4 : f32 to vector<8x1xf32>
    %13 = arith.maximumf %11, %12 : vector<8x1xf32>
    %c0_5 = arith.constant 0 : index
    %c0_6 = arith.constant 0 : index
    %14 = vector.load %arg2[%c0_5, %c0_6] : memref<8x1xf32, #tpu.memory_space<vmem>>, vector<8x1xf32>
    %cst_7 = arith.constant 9.99999974E-6 : f32
    %15 = vector.broadcast %cst_7 : f32 to vector<8x1xf32>
    %16 = arith.addf %13, %15 : vector<8x1xf32>
    %17 = math.rsqrt %16 : vector<8x1xf32>
    %18 = arith.mulf %14, %17 : vector<8x1xf32>
    %c0_8 = arith.constant 0 : index
    %c0_9 = arith.constant 0 : index
    %19 = vector.load %arg3[%c0_8, %c0_9] : memref<8x1xf32, #tpu.memory_space<vmem>>, vector<8x1xf32>
    %20 = arith.mulf %4, %18 : vector<8x1xf32>
    %21 = arith.subf %19, %20 : vector<8x1xf32>
    %22 = vector.broadcast %18 : vector<8x1xf32> to vector<8x256xf32>
    %23 = arith.mulf %0, %22 : vector<8x256xf32>
    %24 = vector.broadcast %21 : vector<8x1xf32> to vector<8x256xf32>
    %25 = arith.addf %23, %24 : vector<8x256xf32>
    %c0_10 = arith.constant 0 : index
    %c0_11 = arith.constant 0 : index
    %26 = vector.load %arg4[%c0_10, %c0_11] : memref<8x256xf32, #tpu.memory_space<vmem>>, vector<8x256xf32>
    tpu.vector_store %arg4[%c0_10, %c0_11], %25 {strides = array<i32>} : memref<8x256xf32, #tpu.memory_space<vmem>>, vector<8x256xf32>,
    return
  }
  func.func @transform_0(%arg0: i32) -> (i32, i32) {
    %c0_i32 = arith.constant 0 : i32
    %c0_i32_0 = arith.constant 0 : i32
    return %arg0, %c0_i32 : i32, i32
  }
  func.func @transform_1(%arg0: i32) -> (i32, i32) {
    %c0_i32 = arith.constant 0 : i32
    %c0_i32_0 = arith.constant 0 : i32
    return %arg0, %c0_i32 : i32, i32
  }
  func.func @transform_2(%arg0: i32) -> (i32, i32) {
    %c0_i32 = arith.constant 0 : i32
    %c0_i32_0 = arith.constant 0 : i32
    return %arg0, %c0_i32 : i32, i32
  }
  func.func @transform_3(%arg0: i32) -> (i32, i32) {
    %c0_i32 = arith.constant 0 : i32
    %c0_i32_0 = arith.constant 0 : i32
    return %arg0, %c0_i32 : i32, i32
  }
}

</mosaic_0001>

<llo_original>
// kernel: adaptive_instance_norm.2
$region0: #{adaptive_instance_norm.2}
  #allocation0 [shape = 'u32[]', space=smem, size = 0x4, offset = 0x4, fixed_abs, tag = 'smem constant byte address 0x4 - core index']
  #allocation1 [shape = 'u32[72,128]{1,0:T(1,128)}', space=vmem, size = 0x9000, scoped, tag = 'internal scratch']
  %s0 = inlined_call_operand.vmem [shape: f32[2,32], index: 0, kind: input, shape index: {}]
  %s1 = inlined_call_operand.vmem [shape: f32[32,8], index: 1, kind: input, shape index: {}]
  %s2 = inlined_call_operand.vmem [shape: f32[1,8], index: 2, kind: input, shape index: {}]
  %s3 = inlined_call_operand.vmem [shape: f32[2,8], index: 3, kind: output, shape index: {}]
  %s4 = sld [smem:[#allocation0]]
  $region22: #{adaptive_instance_norm.2} parent=0
    _
  %s6 = ssub.s32 1, %s4
  %s7 = scalar_select 0, %s6, %s4
  // Predicated region
  $region2: #{adaptive_instance_norm.2} parent=0 // pred_check
    _
  $region3: #{adaptive_instance_norm.2} parent=0 // pred_check_branch
    %9 = sbr.rel (0) target = $region5
  $region4: #{adaptive_instance_norm.2} parent=0 // pred_region
    _
  $region5: #{adaptive_instance_norm.2} parent=0 // pred_fallthru
    _
  // Predicated region
  $region6: #{adaptive_instance_norm.2} parent=0 // pred_check
    _
  $region7: #{adaptive_instance_norm.2} parent=0 // pred_check_branch
    %11 = sbr.rel (0) target = $region9
  $region8: #{adaptive_instance_norm.2} parent=0 // pred_region
    _
  $region9: #{adaptive_instance_norm.2} parent=0 // pred_fallthru
    _
  // Predicated region
  $region10: #{adaptive_instance_norm.2} parent=0 // pred_check
    _
  $region11: #{adaptive_instance_norm.2} parent=0 // pred_check_branch
    %13 = sbr.rel (0) target = $region13
  $region12: #{adaptive_instance_norm.2} parent=0 // pred_region
    _
  $region13: #{adaptive_instance_norm.2} parent=0 // pred_fallthru
    _
  %v14 = vld [vmem:[%s0] sm:$0x3]
  %v15 = vld [vmem:[%s1] sm:$0xff]
  %v16 = vld [vmem:[%s1 + $0x8] sm:$0xff]
  %v17 = vld [vmem:[%s1 + $0x10] sm:$0xff]
  %v18 = vld [vmem:[%s1 + $0x18] sm:$0xff]
  %v19 = vld [vmem:[%s2] sm:$0x1]
  %v21 = vperm.slane %v19, 0
  %vm23 = vcmask 261120
  %v25 = vsel %vm23, %v14, 0
  %27 = vmatpush.msra.mxu0 0.0
  %28 = vmatpush.msra.mxu0 0.0
  %29 = vmatpush.msra.mxu0 0.0
  %30 = vmatpush.msra.mxu0 0.0
  %31 = vmatpush.msra.mxu0 0.0
  %32 = vmatpush.msra.mxu0 0.0
  %33 = vmatpush.msra.mxu0 0.0
  %34 = vmatpush.msra.mxu0 0.0
  %35 = vmatpush.msra.mxu0 0.0
  %36 = vmatpush.msra.mxu0 0.0
  %37 = vmatpush.msra.mxu0 0.0
  %38 = vmatpush.msra.mxu0 0.0
  %39 = vmatpush.msra.mxu0 %v18
  %40 = vmatpush.msra.mxu0 %v17
  %41 = vmatpush.msra.mxu0 %v16
  %42 = vmatpush.msra.mxu0 %v15
  %43 = vmatmul.f32.gmra.mxu0 %v25
  %v44 = vpop.f32.mrf.mxu0
  %v45 = vadd.f32 %v21, %v44
  %46 = vdwg.mxu0
  %vm47 = vcmask 58368
  %48 = vst.msk [vmem:[%s3] sm:$0x3] %vm47, %v45
  // Predicated region
  $region14: #{adaptive_instance_norm.2} parent=0 // pred_check
    _
  $region15: #{adaptive_instance_norm.2} parent=0 // pred_check_branch
    %50 = sbr.rel (0) target = $region17
  $region16: #{adaptive_instance_norm.2} parent=0 // pred_region
    _
  $region17: #{adaptive_instance_norm.2} parent=0 // pred_fallthru
    _
  // Predicated region
  $region18: #{adaptive_instance_norm.2} parent=0 // pred_check
    _
  $region19: #{adaptive_instance_norm.2} parent=0 // pred_check_branch
    %52 = sbr.rel (0) target = $region21
  $region20: #{adaptive_instance_norm.2} parent=0 // pred_region
    _
  $region21: #{adaptive_instance_norm.2} parent=0 // pred_fallthru
    _

// kernel: adaptive_instance_norm.3
$region0: #{adaptive_instance_norm.3}
  #allocation0 [shape = 'u32[]', space=smem, size = 0x4, offset = 0x4, fixed_abs, tag = 'smem constant byte address 0x4 - core index']
  #allocation1 [shape = 'u32[72,128]{1,0:T(1,128)}', space=vmem, size = 0x9000, scoped, tag = 'internal scratch']
  %s0 = inlined_call_operand.vmem [shape: f32[8,256], index: 0, kind: input, shape index: {}]
  %s1 = inlined_call_operand.vmem [shape: f32[8,1], index: 1, kind: input, shape index: {}]
  %s2 = inlined_call_operand.vmem [shape: f32[8,1], index: 2, kind: input, shape index: {}]
  %s3 = inlined_call_operand.vmem [shape: f32[8,256], index: 3, kind: output, shape index: {}]
  %s4 = sld [smem:[#allocation0]]
  $region22: #{adaptive_instance_norm.3} parent=0
    _
  %s6 = ssub.s32 1, %s4
  %s7 = scalar_select 0, %s6, %s4
  // Predicated region
  $region2: #{adaptive_instance_norm.3} parent=0 // pred_check
    _
  $region3: #{adaptive_instance_norm.3} parent=0 // pred_check_branch
    %9 = sbr.rel (0) target = $region5
  $region4: #{adaptive_instance_norm.3} parent=0 // pred_region
    _
  $region5: #{adaptive_instance_norm.3} parent=0 // pred_fallthru
    _
  // Predicated region
  $region6: #{adaptive_instance_norm.3} parent=0 // pred_check
    _
  $region7: #{adaptive_instance_norm.3} parent=0 // pred_check_branch
    %11 = sbr.rel (0) target = $region9
  $region8: #{adaptive_instance_norm.3} parent=0 // pred_region
    _
  $region9: #{adaptive_instance_norm.3} parent=0 // pred_fallthru
    _
  // Predicated region
  $region10: #{adaptive_instance_norm.3} parent=0 // pred_check
    _
  $region11: #{adaptive_instance_norm.3} parent=0 // pred_check_branch
    %13 = sbr.rel (0) target = $region13
  $region12: #{adaptive_instance_norm.3} parent=0 // pred_region
    _
  $region13: #{adaptive_instance_norm.3} parent=0 // pred_fallthru
    _
  %v14 = vld [vmem:[%s0] sm:$0xff]
  %v15 = vld [vmem:[%s0 + $0x8] sm:$0xff]
  %v16 = vadd.f32 %v14, %v15
  %17 = vadd.xlane.f32.xlu0 %v16
  %v18 = vpop.xlane.xlu0 %17
  %v19 = vmul.f32 %v18, 0.00390625
  %v20 = vmul.f32 %v14, %v14
  %v21 = vmul.f32 %v15, %v15
  %v22 = vadd.f32 %v20, %v21
  %23 = vadd.xlane.f32.xlu0 %v22
  %v24 = vpop.xlane.xlu0 %23
  %v25 = vmul.f32 %v24, 0.00390625
  %v26 = vmul.f32 %v19, %v19
  %v27 = vsub.f32 %v25, %v26
  %v28 = vmax.f32 %v27, 0.0
  %v29 = vld [vmem:[%s1] sm:$0xff]
  %v30 = vadd.f32 %v28, 1e-05
  %v31 = vrsqrt.pop %v30
  %v32 = vmul.f32 %v31, %v30
  %v33 = vmul.f32 %v32, %v31
  %v34 = vmul.f32 0.5, %v33
  %v35 = vsub.f32 1.5, %v34
  %v36 = vmul.f32 %v31, %v35
  %vm37 = vweird.f32 %v30
  %vm38 = vweird.f32 %v31
  %vm39 = vmor %vm37, %vm38
  %v40 = vsel %vm39, %v31, %v36
  %v41 = vmul.f32 %v29, %v40
  %v42 = vld [vmem:[%s2] sm:$0xff]
  %v43 = vmul.f32 %v19, %v41
  %v44 = vsub.f32 %v42, %v43
  %46 = vset.pattern.permute.xlu0 0
  %47 = vperm.xlu0 %46, %v41
  %v48 = vpop.permute.xlu0 %47
  %v50 = vmul.f32 %v14, %v48
  %v51 = vmul.f32 %v15, %v48
  %53 = vset.pattern.permute.xlu0 0
  %54 = vperm.xlu0 %53, %v44
  %v55 = vpop.permute.xlu0 %54
  %v57 = vadd.f32 %v50, %v55
  %v58 = vadd.f32 %v51, %v55
  %59 = vst [vmem:[%s3] sm:$0xff] %v57
  %60 = vst [vmem:[%s3 + $0x8] sm:$0xff] %v58
  // Predicated region
  $region14: #{adaptive_instance_norm.3} parent=0 // pred_check
    _
  $region15: #{adaptive_instance_norm.3} parent=0 // pred_check_branch
    %62 = sbr.rel (0) target = $region17
  $region16: #{adaptive_instance_norm.3} parent=0 // pred_region
    _
  $region17: #{adaptive_instance_norm.3} parent=0 // pred_fallthru
    _
  // Predicated region
  $region18: #{adaptive_instance_norm.3} parent=0 // pred_check
    _
  $region19: #{adaptive_instance_norm.3} parent=0 // pred_check_branch
    %64 = sbr.rel (0) target = $region21
  $region20: #{adaptive_instance_norm.3} parent=0 // pred_region
    _
  $region21: #{adaptive_instance_norm.3} parent=0 // pred_fallthru
    _

</llo_original>
